<compile_context>
chip_gen: v7x
topology: tpu7x:2x2x1
jax: 0.10.0
libtpu: 0.0.40
codegen_flags: <defaults>
</compile_context>

<pallas_src>
import functools

import jax
import jax.numpy as jnp
from jax.experimental import pallas as pl
from jax.experimental.pallas import tpu as pltpu

IN_FEATURES = 53
HIDDEN = 300
OUT_FEATURES = 3


def _round_up(x: int, m: int) -> int:
    return ((x + m - 1) // m) * m


def mlp_kernel(x_ref, w1_ref, b1_ref, w2_ref, b2_ref, o_ref):
    # One batch tile per grid step; both matmuls + ReLU run entirely in VMEM.
    x = x_ref[...].astype(jnp.float32)                      # data.float()
    h = jnp.dot(x, w1_ref[...], preferred_element_type=jnp.float32) + b1_ref[...]
    h = jnp.maximum(h, 0.0)                                  # ReLU
    o = jnp.dot(h, w2_ref[...], preferred_element_type=jnp.float32) + b2_ref[...]
    o_ref[...] = o.astype(o_ref.dtype)


@functools.partial(jax.jit, static_argnames=("tb",))
def classification_model_forward(x, w1, b1, w2, b2, *, tb: int = 1024):
    """x: [B, 53] (any float dtype) -> [B, 3] float32. Params are float32."""
    B = x.shape[0]

    # Batch tile: multiple of 8 (sublane), capped so tiny batches use one tile.
    TB = min(tb, _round_up(max(B, 1), 8))
    TB = _round_up(TB, 8)
    Bp = _round_up(B, TB)
    if Bp != B:
        x = jnp.pad(x, ((0, Bp - B), (0, 0)))

    grid = (Bp // TB,)

    out = pl.pallas_call(
        mlp_kernel,
        out_shape=jax.ShapeDtypeStruct((Bp, OUT_FEATURES), jnp.float32),
        grid=grid,
        in_specs=[
            # x: tiled over batch -> pipelined / double-buffered by Pallas.
            pl.BlockSpec((TB, IN_FEATURES), lambda i: (i, 0)),
            # Weights & biases: constant index_map -> DMA'd once, stay resident.
            pl.BlockSpec((IN_FEATURES, HIDDEN), lambda i: (0, 0)),
            pl.BlockSpec((1, HIDDEN), lambda i: (0, 0)),
            pl.BlockSpec((HIDDEN, OUT_FEATURES), lambda i: (0, 0)),
            pl.BlockSpec((1, OUT_FEATURES), lambda i: (0, 0)),
        ],
        out_specs=pl.BlockSpec((TB, OUT_FEATURES), lambda i: (i, 0)),
        compiler_params=pltpu.CompilerParams(
            dimension_semantics=("parallel",),
        ),
    )(x, w1, b1, w2, b2)

    return out[:B]


def init_params(key):
    """Deterministic init matching torch.nn.Linear's U(-1/sqrt(fan_in), 1/sqrt(fan_in))."""
    k1, k2, k3, k4 = jax.random.split(key, 4)
    bound1 = 1.0 / jnp.sqrt(jnp.float32(IN_FEATURES))
    bound2 = 1.0 / jnp.sqrt(jnp.float32(HIDDEN))
    w1 = jax.random.uniform(k1, (IN_FEATURES, HIDDEN), jnp.float32, -bound1, bound1)
    b1 = jax.random.uniform(k2, (1, HIDDEN), jnp.float32, -bound1, bound1)
    w2 = jax.random.uniform(k3, (HIDDEN, OUT_FEATURES), jnp.float32, -bound2, bound2)
    b2 = jax.random.uniform(k4, (1, OUT_FEATURES), jnp.float32, -bound2, bound2)
    return w1, b1, w2, b2


if __name__ == "__main__":
    key = jax.random.PRNGKey(0)
    k_params, k_data = jax.random.split(key)
    w1, b1, w2, b2 = init_params(k_params)

    def ref_forward(x):
        xf = x.astype(jnp.float32)
        return jnp.maximum(xf @ w1 + b1, 0.0) @ w2 + b2

    # Small test 1: tiny batch, single tile (default TB).
    B1 = 8
    x1 = jax.random.normal(k_data, (B1, IN_FEATURES), jnp.float32)
    out1 = classification_model_forward(x1, w1, b1, w2, b2)
    jax.block_until_ready(out1)
    assert out1.shape == (B1, OUT_FEATURES)
    assert jnp.allclose(out1, ref_forward(x1), atol=1e-5, rtol=1e-5)

    # Small test 2: exercises the multi-tile batch grid + edge padding
    # (B=20 with TB=8 -> grid of 3 tiles, last tile padded).
    B2 = 20
    x2 = jax.random.normal(jax.random.fold_in(k_data, 1), (B2, IN_FEATURES), jnp.float32)
    out2 = classification_model_forward(x2, w1, b1, w2, b2, tb=8)
    jax.block_until_ready(out2)
    assert out2.shape == (B2, OUT_FEATURES)
    assert jnp.allclose(out2, ref_forward(x2), atol=1e-5, rtol=1e-5)

    print("KERNEL_OK")
</pallas_src>

<mosaic_0001>
module attributes {stable_mosaic.version = 11 : i64} {
  func.func @mlp_kernel(%arg0: i32, %arg1: memref<8x53xf32, #tpu.memory_space<vmem>>, %arg2: memref<53x300xf32, #tpu.memory_space<vmem>>, %arg3: memref<1x300xf32, #tpu.memory_space<vmem>>, %arg4: memref<300x3xf32, #tpu.memory_space<vmem>>, %arg5: memref<1x3xf32, #tpu.memory_space<vmem>>, %arg6: memref<8x3xf32, #tpu.memory_space<vmem>>) attributes {dimension_semantics = [#tpu.dimension_semantics<parallel>], iteration_bounds = array<i64: 1>, scalar_prefetch = 0 : i64, scratch_operands = 0 : i64, tpu.core_type = #tpu.core_type<tc>, window_params = [{transform_indices = @transform_0, window_bounds = array<i64: 8, 53>}, {pipeline_mode = #tpu.pipeline_mode<synchronous>, transform_indices = @transform_1, window_bounds = array<i64: 53, 300>}, {pipeline_mode = #tpu.pipeline_mode<synchronous>, transform_indices = @transform_2, window_bounds = array<i64: 1, 300>}, {pipeline_mode = #tpu.pipeline_mode<synchronous>, transform_indices = @transform_3, window_bounds = array<i64: 300, 3>}, {pipeline_mode = #tpu.pipeline_mode<synchronous>, transform_indices = @transform_4, window_bounds = array<i64: 1, 3>}, {transform_indices = @transform_5, window_bounds = array<i64: 8, 3>}]} {
    %c0 = arith.constant 0 : index
    %c0_0 = arith.constant 0 : index
    %0 = vector.load %arg1[%c0, %c0_0] : memref<8x53xf32, #tpu.memory_space<vmem>>, vector<8x53xf32>
    %c0_1 = arith.constant 0 : index
    %c0_2 = arith.constant 0 : index
    %1 = vector.load %arg2[%c0_1, %c0_2] : memref<53x300xf32, #tpu.memory_space<vmem>>, vector<53x300xf32>
    %cst = arith.constant dense<0.000000e+00> : vector<8x300xf32>
    %2 = tpu.matmul %0, %1, %cst {dimension_numbers = #tpu.dot_dimension_numbers<[1], [0], [0], [1], [0, 0, 1, 1], [], []>} : vector<8x53xf32>, vector<53x300xf32>, vector<8x300xf32> -> vector<8x300xf32>
    %c0_3 = arith.constant 0 : index
    %c0_4 = arith.constant 0 : index
    %3 = vector.load %arg3[%c0_3, %c0_4] : memref<1x300xf32, #tpu.memory_space<vmem>>, vector<1x300xf32>
    %4 = vector.broadcast %3 : vector<1x300xf32> to vector<8x300xf32>
    %5 = arith.addf %2, %4 : vector<8x300xf32>
    %cst_5 = arith.constant 0.000000e+00 : f32
    %6 = vector.broadcast %cst_5 : f32 to vector<8x300xf32>
    %7 = arith.maximumf %5, %6 : vector<8x300xf32>
    %c0_6 = arith.constant 0 : index
    %c0_7 = arith.constant 0 : index
    %8 = vector.load %arg4[%c0_6, %c0_7] : memref<300x3xf32, #tpu.memory_space<vmem>>, vector<300x3xf32>
    %cst_8 = arith.constant dense<0.000000e+00> : vector<8x3xf32>
    %9 = tpu.matmul %7, %8, %cst_8 {dimension_numbers = #tpu.dot_dimension_numbers<[1], [0], [0], [1], [0, 0, 1, 1], [], []>} : vector<8x300xf32>, vector<300x3xf32>, vector<8x3xf32> -> vector<8x3xf32>
    %c0_9 = arith.constant 0 : index
    %c0_10 = arith.constant 0 : index
    %10 = vector.load %arg5[%c0_9, %c0_10] : memref<1x3xf32, #tpu.memory_space<vmem>>, vector<1x3xf32>
    %11 = vector.broadcast %10 : vector<1x3xf32> to vector<8x3xf32>
    %12 = arith.addf %9, %11 : vector<8x3xf32>
    %c0_11 = arith.constant 0 : index
    %c0_12 = arith.constant 0 : index
    %13 = vector.load %arg6[%c0_11, %c0_12] : memref<8x3xf32, #tpu.memory_space<vmem>>, vector<8x3xf32>
    tpu.vector_store %arg6[%c0_11, %c0_12], %12 {strides = array<i32>} : memref<8x3xf32, #tpu.memory_space<vmem>>, vector<8x3xf32>,
    return
  }
  func.func @transform_0(%arg0: i32) -> (i32, i32) {
    %c0_i32 = arith.constant 0 : i32
    %c0_i32_0 = arith.constant 0 : i32
    return %arg0, %c0_i32 : i32, i32
  }
  func.func @transform_1(%arg0: i32) -> (i32, i32) {
    %c0_i32 = arith.constant 0 : i32
    %c0_i32_0 = arith.constant 0 : i32
    %c0_i32_1 = arith.constant 0 : i32
    return %c0_i32, %c0_i32_0 : i32, i32
  }
  func.func @transform_2(%arg0: i32) -> (i32, i32) {
    %c0_i32 = arith.constant 0 : i32
    %c0_i32_0 = arith.constant 0 : i32
    %c0_i32_1 = arith.constant 0 : i32
    return %c0_i32, %c0_i32_0 : i32, i32
  }
  func.func @transform_3(%arg0: i32) -> (i32, i32) {
    %c0_i32 = arith.constant 0 : i32
    %c0_i32_0 = arith.constant 0 : i32
    %c0_i32_1 = arith.constant 0 : i32
    return %c0_i32, %c0_i32_0 : i32, i32
  }
  func.func @transform_4(%arg0: i32) -> (i32, i32) {
    %c0_i32 = arith.constant 0 : i32
    %c0_i32_0 = arith.constant 0 : i32
    %c0_i32_1 = arith.constant 0 : i32
    return %c0_i32, %c0_i32_0 : i32, i32
  }
  func.func @transform_5(%arg0: i32) -> (i32, i32) {
    %c0_i32 = arith.constant 0 : i32
    %c0_i32_0 = arith.constant 0 : i32
    return %arg0, %c0_i32 : i32, i32
  }
}

</mosaic_0001>

<llo_original>
// kernel: classification_model_forward.1
$region0: #{classification_model_forward.1}
  #allocation0 [shape = 'u32[]', space=smem, size = 0x4, offset = 0x4, fixed_abs, tag = 'smem constant byte address 0x4 - core index']
  #allocation1 [shape = 'u32[144,128]{1,0:T(1,128)}', space=vmem, size = 0x12000, scoped, tag = 'internal scratch']
  %s0 = inlined_call_operand.vmem [shape: f32[8,53], index: 0, kind: input, shape index: {}]
  %s1 = inlined_call_operand.vmem [shape: f32[53,300], index: 1, kind: input, shape index: {}]
  %s2 = inlined_call_operand.vmem [shape: f32[1,300], index: 2, kind: input, shape index: {}]
  %s3 = inlined_call_operand.vmem [shape: f32[300,3], index: 3, kind: input, shape index: {}]
  %s4 = inlined_call_operand.vmem [shape: f32[1,3], index: 4, kind: input, shape index: {}]
  %s5 = inlined_call_operand.vmem [shape: f32[8,3], index: 5, kind: output, shape index: {}]
  %s6 = sld [smem:[#allocation0]]
  $region30: #{classification_model_forward.1} parent=0
    _
  %s8 = ssub.s32 1, %s6
  %s9 = scalar_select 0, %s8, %s6
  // Predicated region
  $region2: #{classification_model_forward.1} parent=0 // pred_check
    _
  $region3: #{classification_model_forward.1} parent=0 // pred_check_branch
    %11 = sbr.rel (0) target = $region5
  $region4: #{classification_model_forward.1} parent=0 // pred_region
    _
  $region5: #{classification_model_forward.1} parent=0 // pred_fallthru
    _
  // Predicated region
  $region6: #{classification_model_forward.1} parent=0 // pred_check
    _
  $region7: #{classification_model_forward.1} parent=0 // pred_check_branch
    %13 = sbr.rel (0) target = $region9
  $region8: #{classification_model_forward.1} parent=0 // pred_region
    _
  $region9: #{classification_model_forward.1} parent=0 // pred_fallthru
    _
  // Predicated region
  $region10: #{classification_model_forward.1} parent=0 // pred_check
    _
  $region11: #{classification_model_forward.1} parent=0 // pred_check_branch
    %15 = sbr.rel (0) target = $region13
  $region12: #{classification_model_forward.1} parent=0 // pred_region
    _
  $region13: #{classification_model_forward.1} parent=0 // pred_fallthru
    _
  // Predicated region
  $region14: #{classification_model_forward.1} parent=0 // pred_check
    _
  $region15: #{classification_model_forward.1} parent=0 // pred_check_branch
    %17 = sbr.rel (0) target = $region17
  $region16: #{classification_model_forward.1} parent=0 // pred_region
    _
  $region17: #{classification_model_forward.1} parent=0 // pred_fallthru
    _
  // Predicated region
  $region18: #{classification_model_forward.1} parent=0 // pred_check
    _
  $region19: #{classification_model_forward.1} parent=0 // pred_check_branch
    %19 = sbr.rel (0) target = $region21
  $region20: #{classification_model_forward.1} parent=0 // pred_region
    _
  $region21: #{classification_model_forward.1} parent=0 // pred_fallthru
    _
  %v20 = vld [vmem:[%s0] sm:$0xff]
  %v21 = vld [vmem:[%s1] sm:$0xff]
  %v22 = vld [vmem:[%s1 + $0x8] sm:$0xff]
  %v23 = vld [vmem:[%s1 + $0x10] sm:$0xff]
  %v24 = vld [vmem:[%s1 + $0x18] sm:$0xff]
  %v25 = vld [vmem:[%s1 + $0x20] sm:$0xff]
  %v26 = vld [vmem:[%s1 + $0x28] sm:$0xff]
  %v27 = vld [vmem:[%s1 + $0x30] sm:$0xff]
  %v28 = vld [vmem:[%s1 + $0x38] sm:$0xff]
  %v29 = vld [vmem:[%s1 + $0x40] sm:$0xff]
  %v30 = vld [vmem:[%s1 + $0x48] sm:$0xff]
  %v31 = vld [vmem:[%s1 + $0x50] sm:$0xff]
  %v32 = vld [vmem:[%s1 + $0x58] sm:$0xff]
  %v33 = vld [vmem:[%s1 + $0x60] sm:$0xff]
  %v34 = vld [vmem:[%s1 + $0x68] sm:$0xff]
  %v35 = vld [vmem:[%s1 + $0x70] sm:$0xff]
  %v36 = vld [vmem:[%s1 + $0x78] sm:$0xff]
  %v37 = vld [vmem:[%s1 + $0x80] sm:$0xff]
  %v38 = vld [vmem:[%s1 + $0x88] sm:$0xff]
  %v39 = vld [vmem:[%s1 + $0x90] sm:$0x1f]
  %v40 = vld [vmem:[%s1 + $0x98] sm:$0x1f]
  %v41 = vld [vmem:[%s1 + $0xa0] sm:$0x1f]
  %v42 = vld [vmem:[%s2] sm:$0x7]
  %v44 = vlaneseq
  %v45 = vshrl.u32 %v44, 7
  %v46 = vsub.s32 0, %v45
  %v47 = vrot.slane %v42, %v46
  %v48 = vlaneseq
  %v49 = vshrl.u32 %v48, 7
  %v50 = vsub.s32 1, %v49
  %v51 = vrot.slane %v42, %v50
  %v52 = vlaneseq
  %v53 = vshrl.u32 %v52, 7
  %v54 = vsub.s32 2, %v53
  %v55 = vrot.slane %v42, %v54
  %vm59 = vcmask 433152
  %v61 = vsel %vm59, %v20, 0
  %vm63 = vcmask 1044480
  %v65 = vsel %vm63, %v39, 0
  %v68 = vsel %vm63, %v40, 0
  %v71 = vsel %vm63, %v41, 0
  %73 = vmatprep.subr.mxu0 %v22
  %74 = vmatpush1.msra.mxu0 %v21
  %75 = vmatprep.subr.mxu0 %v25
  %76 = vmatpush1.msra.mxu0 %v24
  %77 = vmatprep.subr.mxu0 %v28
  %78 = vmatpush1.msra.mxu0 %v27
  %79 = vmatprep.subr.mxu0 %v31
  %80 = vmatpush1.msra.mxu0 %v30
  %81 = vmatprep.subr.mxu0 %v34
  %82 = vmatpush1.msra.mxu0 %v33
  %83 = vmatprep.subr.mxu0 %v37
  %84 = vmatpush1.msra.mxu0 %v36
  %85 = vmatprep.subr.mxu0 %v68
  %86 = vmatpush1.msra.mxu0 %v65
  %87 = vmatprep.subr.mxu0 0.0
  %88 = vmatpush1.msra.mxu0 0.0
  %89 = vmatprep.subr.mxu0 0.0
  %90 = vmatpush1.msra.mxu0 0.0
  %91 = vmatprep.subr.mxu0 0.0
  %92 = vmatpush1.msra.mxu0 0.0
  %93 = vmatprep.subr.mxu0 0.0
  %94 = vmatpush1.msra.mxu0 0.0
  %95 = vmatprep.subr.mxu0 0.0
  %96 = vmatpush1.msra.mxu0 0.0
  %97 = vmatprep.subr.mxu0 0.0
  %98 = vmatpush1.msra.mxu0 0.0
  %99 = vmatprep.subr.mxu0 0.0
  %100 = vmatpush1.msra.mxu0 0.0
  %101 = vmatprep.subr.mxu0 0.0
  %102 = vmatpush1.msra.mxu0 0.0
  %103 = vmatprep.subr.mxu0 0.0
  %104 = vmatpush1.msra.mxu0 0.0
  %105 = vmatprep.subr.mxu0 0.0
  %106 = vmatpush1.msra.mxu0 0.0
  %107 = vmatprep.subr.mxu0 0.0
  %108 = vmatpush1.msra.mxu0 0.0
  %109 = vmatprep.subr.mxu0 0.0
  %110 = vmatpush1.msra.mxu0 0.0
  %111 = vmatprep.subr.mxu0 0.0
  %112 = vmatpush1.msra.mxu0 0.0
  %113 = vmatprep.subr.mxu0 0.0
  %114 = vmatpush1.msra.mxu0 0.0
  %115 = vmatprep.subr.mxu0 0.0
  %116 = vmatpush1.msra.mxu0 0.0
  %117 = vmatprep.subr.mxu0 0.0
  %118 = vmatpush1.msra.mxu0 0.0
  %119 = vmatprep.subr.mxu0 0.0
  %120 = vmatpush1.msra.mxu0 0.0
  %121 = vmatprep.subr.mxu0 0.0
  %122 = vmatpush1.msra.mxu0 0.0
  %123 = vmatprep.subr.mxu0 0.0
  %124 = vmatpush1.msra.mxu0 0.0
  %125 = vmatprep.subr.mxu0 0.0
  %126 = vmatpush1.msra.mxu0 0.0
  %127 = vmatprep.subr.mxu0 0.0
  %128 = vmatpush1.msra.mxu0 0.0
  %129 = vmatprep.subr.mxu0 0.0
  %130 = vmatpush1.msra.mxu0 0.0
  %131 = vmatprep.subr.mxu0 0.0
  %132 = vmatpush1.msra.mxu0 0.0
  %133 = vmatprep.subr.mxu0 0.0
  %134 = vmatpush1.msra.mxu0 0.0
  %135 = vmatprep.subr.mxu0 0.0
  %136 = vmatpush1.msra.mxu0 0.0
  %137 = vmatprep.mubr.f32.mxu0 0.0
  %138 = vmatmul.mubr.f32.gmra.mrb[0].mxu0 %v61
  %v139 = vpop.f32.mrb[0].mxu0
  %v140 = vadd.f32 %v47, %v139
  %v141 = vpop.f32.mrb[0].mxu0
  %v142 = vadd.f32 %v51, %v141
  %143 = vdwg.mxu0
  %144 = vmatprep.subr.mxu0 0.0
  %145 = vmatpush1.msra.mxu0 %v23
  %146 = vmatprep.subr.mxu0 0.0
  %147 = vmatpush1.msra.mxu0 %v26
  %148 = vmatprep.subr.mxu0 0.0
  %149 = vmatpush1.msra.mxu0 %v29
  %150 = vmatprep.subr.mxu0 0.0
  %151 = vmatpush1.msra.mxu0 %v32
  %152 = vmatprep.subr.mxu0 0.0
  %153 = vmatpush1.msra.mxu0 %v35
  %154 = vmatprep.subr.mxu0 0.0
  %155 = vmatpush1.msra.mxu0 %v38
  %156 = vmatprep.subr.mxu0 0.0
  %157 = vmatpush1.msra.mxu0 %v71
  %158 = vmatprep.subr.mxu0 0.0
  %159 = vmatpush1.msra.mxu0 0.0
  %160 = vmatprep.subr.mxu0 0.0
  %161 = vmatpush1.msra.mxu0 0.0
  %162 = vmatprep.subr.mxu0 0.0
  %163 = vmatpush1.msra.mxu0 0.0
  %164 = vmatprep.subr.mxu0 0.0
  %165 = vmatpush1.msra.mxu0 0.0
  %166 = vmatprep.subr.mxu0 0.0
  %167 = vmatpush1.msra.mxu0 0.0
  %168 = vmatprep.subr.mxu0 0.0
  %169 = vmatpush1.msra.mxu0 0.0
  %170 = vmatprep.subr.mxu0 0.0
  %171 = vmatpush1.msra.mxu0 0.0
  %172 = vmatprep.subr.mxu0 0.0
  %173 = vmatpush1.msra.mxu0 0.0
  %174 = vmatprep.subr.mxu0 0.0
  %175 = vmatpush1.msra.mxu0 0.0
  %176 = vmatprep.subr.mxu0 0.0
  %177 = vmatpush1.msra.mxu0 0.0
  %178 = vmatprep.subr.mxu0 0.0
  %179 = vmatpush1.msra.mxu0 0.0
  %180 = vmatprep.subr.mxu0 0.0
  %181 = vmatpush1.msra.mxu0 0.0
  %182 = vmatprep.subr.mxu0 0.0
  %183 = vmatpush1.msra.mxu0 0.0
  %184 = vmatprep.subr.mxu0 0.0
  %185 = vmatpush1.msra.mxu0 0.0
  %186 = vmatprep.subr.mxu0 0.0
  %187 = vmatpush1.msra.mxu0 0.0
  %188 = vmatprep.subr.mxu0 0.0
  %189 = vmatpush1.msra.mxu0 0.0
  %190 = vmatprep.subr.mxu0 0.0
  %191 = vmatpush1.msra.mxu0 0.0
  %192 = vmatprep.subr.mxu0 0.0
  %193 = vmatpush1.msra.mxu0 0.0
  %194 = vmatprep.subr.mxu0 0.0
  %195 = vmatpush1.msra.mxu0 0.0
  %196 = vmatprep.subr.mxu0 0.0
  %197 = vmatpush1.msra.mxu0 0.0
  %198 = vmatprep.subr.mxu0 0.0
  %199 = vmatpush1.msra.mxu0 0.0
  %200 = vmatprep.subr.mxu0 0.0
  %201 = vmatpush1.msra.mxu0 0.0
  %202 = vmatprep.subr.mxu0 0.0
  %203 = vmatpush1.msra.mxu0 0.0
  %204 = vmatprep.subr.mxu0 0.0
  %205 = vmatpush1.msra.mxu0 0.0
  %206 = vmatprep.subr.mxu0 0.0
  %207 = vmatpush1.msra.mxu0 0.0
  %208 = vmatprep.mubr.f32.mxu0 0.0
  %209 = vmatmul.mubr.f32.gmra.mrb[0].mxu0 %v61
  %v210 = vpop.f32.mrb[0].mxu0
  %v211 = vadd.f32 %v55, %v210
  %v212 = vpop.f32.mrb[0].mxu0
  %213 = vdwg.mxu0
  %v214 = vmax.f32 %v140, 0.0
  %v215 = vmax.f32 %v142, 0.0
  %v216 = vmax.f32 %v211, 0.0
  %v217 = vld [vmem:[%s3] sm:$0xff]
  %v218 = vld [vmem:[%s3 + $0x8] sm:$0xff]
  %v219 = vld [vmem:[%s3 + $0x10] sm:$0xff]
  %v220 = vld [vmem:[%s3 + $0x18] sm:$0xff]
  %v221 = vld [vmem:[%s3 + $0x20] sm:$0xff]
  %v222 = vld [vmem:[%s3 + $0x28] sm:$0xff]
  %v223 = vld [vmem:[%s3 + $0x30] sm:$0xff]
  %v224 = vld [vmem:[%s3 + $0x38] sm:$0xff]
  %v225 = vld [vmem:[%s3 + $0x40] sm:$0xff]
  %v226 = vld [vmem:[%s3 + $0x48] sm:$0xff]
  %v227 = vld [vmem:[%s3 + $0x50] sm:$0xff]
  %v228 = vld [vmem:[%s3 + $0x58] sm:$0xff]
  %v229 = vld [vmem:[%s3 + $0x60] sm:$0xff]
  %v230 = vld [vmem:[%s3 + $0x68] sm:$0xff]
  %v231 = vld [vmem:[%s3 + $0x70] sm:$0xff]
  %v232 = vld [vmem:[%s3 + $0x78] sm:$0xff]
  %v233 = vld [vmem:[%s3 + $0x80] sm:$0xff]
  %v234 = vld [vmem:[%s3 + $0x88] sm:$0xff]
  %v235 = vld [vmem:[%s3 + $0x90] sm:$0xff]
  %v236 = vld [vmem:[%s3 + $0x98] sm:$0xff]
  %v237 = vld [vmem:[%s3 + $0xa0] sm:$0xff]
  %v238 = vld [vmem:[%s3 + $0xa8] sm:$0xff]
  %v239 = vld [vmem:[%s3 + $0xb0] sm:$0xff]
  %v240 = vld [vmem:[%s3 + $0xb8] sm:$0xff]
  %v241 = vld [vmem:[%s3 + $0xc0] sm:$0xff]
  %v242 = vld [vmem:[%s3 + $0xc8] sm:$0xff]
  %v243 = vld [vmem:[%s3 + $0xd0] sm:$0xff]
  %v244 = vld [vmem:[%s3 + $0xd8] sm:$0xff]
  %v245 = vld [vmem:[%s3 + $0xe0] sm:$0xff]
  %v246 = vld [vmem:[%s3 + $0xe8] sm:$0xff]
  %v247 = vld [vmem:[%s3 + $0xf0] sm:$0xff]
  %v248 = vld [vmem:[%s3 + $0xf8] sm:$0xff]
  %v249 = vld [vmem:[%s3 + $0x100] sm:$0xff]
  %v250 = vld [vmem:[%s3 + $0x108] sm:$0xff]
  %v251 = vld [vmem:[%s3 + $0x110] sm:$0xff]
  %v252 = vld [vmem:[%s3 + $0x118] sm:$0xff]
  %v253 = vld [vmem:[%s3 + $0x120] sm:$0xff]
  %v254 = vld [vmem:[%s3 + $0x128] sm:$0xf]
  %v255 = vld [vmem:[%s4] sm:$0x1]
  %v257 = vlaneseq
  %v258 = vshrl.u32 %v257, 7
  %v259 = vsub.s32 0, %v258
  %v260 = vrot.slane %v255, %v259
  %vm262 = vcmask 359424
  %v264 = vsel %vm262, %v216, 0
  %vm266 = vcmask 1043456
  %v268 = vsel %vm266, %v254, 0
  %270 = vmatprep.subr.mxu0 0.0
  %271 = vmatpush1.msra.mxu0 %v217
  %272 = vmatprep.subr.mxu0 0.0
  %273 = vmatpush1.msra.mxu0 %v218
  %274 = vmatprep.subr.mxu0 0.0
  %275 = vmatpush1.msra.mxu0 %v219
  %276 = vmatprep.subr.mxu0 0.0
  %277 = vmatpush1.msra.mxu0 %v220
  %278 = vmatprep.subr.mxu0 0.0
  %279 = vmatpush1.msra.mxu0 %v221
  %280 = vmatprep.subr.mxu0 0.0
  %281 = vmatpush1.msra.mxu0 %v222
  %282 = vmatprep.subr.mxu0 0.0
  %283 = vmatpush1.msra.mxu0 %v223
  %284 = vmatprep.subr.mxu0 0.0
  %285 = vmatpush1.msra.mxu0 %v224
  %286 = vmatprep.subr.mxu0 0.0
  %287 = vmatpush1.msra.mxu0 %v225
  %288 = vmatprep.subr.mxu0 0.0
  %289 = vmatpush1.msra.mxu0 %v226
  %290 = vmatprep.subr.mxu0 0.0
  %291 = vmatpush1.msra.mxu0 %v227
  %292 = vmatprep.subr.mxu0 0.0
  %293 = vmatpush1.msra.mxu0 %v228
  %294 = vmatprep.subr.mxu0 0.0
  %295 = vmatpush1.msra.mxu0 %v229
  %296 = vmatprep.subr.mxu0 0.0
  %297 = vmatpush1.msra.mxu0 %v230
  %298 = vmatprep.subr.mxu0 0.0
  %299 = vmatpush1.msra.mxu0 %v231
  %300 = vmatprep.subr.mxu0 0.0
  %301 = vmatpush1.msra.mxu0 %v232
  %302 = vmatprep.subr.mxu0 0.0
  %303 = vmatpush1.msra.mxu0 %v233
  %304 = vmatprep.subr.mxu0 0.0
  %305 = vmatpush1.msra.mxu0 %v234
  %306 = vmatprep.subr.mxu0 0.0
  %307 = vmatpush1.msra.mxu0 %v235
  %308 = vmatprep.subr.mxu0 0.0
  %309 = vmatpush1.msra.mxu0 %v236
  %310 = vmatprep.subr.mxu0 0.0
  %311 = vmatpush1.msra.mxu0 %v237
  %312 = vmatprep.subr.mxu0 0.0
  %313 = vmatpush1.msra.mxu0 %v238
  %314 = vmatprep.subr.mxu0 0.0
  %315 = vmatpush1.msra.mxu0 %v239
  %316 = vmatprep.subr.mxu0 0.0
  %317 = vmatpush1.msra.mxu0 %v240
  %318 = vmatprep.subr.mxu0 0.0
  %319 = vmatpush1.msra.mxu0 %v241
  %320 = vmatprep.subr.mxu0 0.0
  %321 = vmatpush1.msra.mxu0 %v242
  %322 = vmatprep.subr.mxu0 0.0
  %323 = vmatpush1.msra.mxu0 %v243
  %324 = vmatprep.subr.mxu0 0.0
  %325 = vmatpush1.msra.mxu0 %v244
  %326 = vmatprep.subr.mxu0 0.0
  %327 = vmatpush1.msra.mxu0 %v245
  %328 = vmatprep.subr.mxu0 0.0
  %329 = vmatpush1.msra.mxu0 %v246
  %330 = vmatprep.subr.mxu0 0.0
  %331 = vmatpush1.msra.mxu0 %v247
  %332 = vmatprep.subr.mxu0 0.0
  %333 = vmatpush1.msra.mxu0 %v248
  %334 = vmatprep.mubr.f32.mxu0 %v215
  %335 = vmatmul.mubr.f32.gmra.mrb[0].mxu0 %v214
  %v336 = vpop.f32.mrb[0].mxu0
  %v337 = vadd.f32 %v260, %v336
  %v338 = vpop.f32.mrb[0].mxu0
  %339 = vdwg.mxu0
  %340 = vmatprep.subr.mxu0 0.0
  %341 = vmatpush1.msra.mxu0 %v249
  %342 = vmatprep.subr.mxu0 0.0
  %343 = vmatpush1.msra.mxu0 %v250
  %344 = vmatprep.subr.mxu0 0.0
  %345 = vmatpush1.msra.mxu0 %v251
  %346 = vmatprep.subr.mxu0 0.0
  %347 = vmatpush1.msra.mxu0 %v252
  %348 = vmatprep.subr.mxu0 0.0
  %349 = vmatpush1.msra.mxu0 %v253
  %350 = vmatprep.subr.mxu0 0.0
  %351 = vmatpush1.msra.mxu0 %v268
  %352 = vmatprep.subr.mxu0 0.0
  %353 = vmatpush1.msra.mxu0 0.0
  %354 = vmatprep.subr.mxu0 0.0
  %355 = vmatpush1.msra.mxu0 0.0
  %356 = vmatprep.subr.mxu0 0.0
  %357 = vmatpush1.msra.mxu0 0.0
  %358 = vmatprep.subr.mxu0 0.0
  %359 = vmatpush1.msra.mxu0 0.0
  %360 = vmatprep.subr.mxu0 0.0
  %361 = vmatpush1.msra.mxu0 0.0
  %362 = vmatprep.subr.mxu0 0.0
  %363 = vmatpush1.msra.mxu0 0.0
  %364 = vmatprep.subr.mxu0 0.0
  %365 = vmatpush1.msra.mxu0 0.0
  %366 = vmatprep.subr.mxu0 0.0
  %367 = vmatpush1.msra.mxu0 0.0
  %368 = vmatprep.subr.mxu0 0.0
  %369 = vmatpush1.msra.mxu0 0.0
  %370 = vmatprep.subr.mxu0 0.0
  %371 = vmatpush1.msra.mxu0 0.0
  %372 = vmatprep.subr.mxu0 0.0
  %373 = vmatpush1.msra.mxu0 0.0
  %374 = vmatprep.subr.mxu0 0.0
  %375 = vmatpush1.msra.mxu0 0.0
  %376 = vmatprep.subr.mxu0 0.0
  %377 = vmatpush1.msra.mxu0 0.0
  %378 = vmatprep.subr.mxu0 0.0
  %379 = vmatpush1.msra.mxu0 0.0
  %380 = vmatprep.subr.mxu0 0.0
  %381 = vmatpush1.msra.mxu0 0.0
  %382 = vmatprep.subr.mxu0 0.0
  %383 = vmatpush1.msra.mxu0 0.0
  %384 = vmatprep.subr.mxu0 0.0
  %385 = vmatpush1.msra.mxu0 0.0
  %386 = vmatprep.subr.mxu0 0.0
  %387 = vmatpush1.msra.mxu0 0.0
  %388 = vmatprep.subr.mxu0 0.0
  %389 = vmatpush1.msra.mxu0 0.0
  %390 = vmatprep.subr.mxu0 0.0
  %391 = vmatpush1.msra.mxu0 0.0
  %392 = vmatprep.subr.mxu0 0.0
  %393 = vmatpush1.msra.mxu0 0.0
  %394 = vmatprep.subr.mxu0 0.0
  %395 = vmatpush1.msra.mxu0 0.0
  %396 = vmatprep.subr.mxu0 0.0
  %397 = vmatpush1.msra.mxu0 0.0
  %398 = vmatprep.subr.mxu0 0.0
  %399 = vmatpush1.msra.mxu0 0.0
  %400 = vmatprep.subr.mxu0 0.0
  %401 = vmatpush1.msra.mxu0 0.0
  %402 = vmatprep.subr.mxu0 0.0
  %403 = vmatpush1.msra.mxu0 0.0
  %404 = vmatprep.mubr.f32.mxu0 0.0
  %405 = vmatmul.mubr.f32.gmra.mrb[0].mxu0 %v264
  %v406 = vpop.f32.mrb[0].mxu0
  %v407 = vadd.f32 %v337, %v406
  %v408 = vpop.f32.mrb[0].mxu0
  %409 = vdwg.mxu0
  %vm410 = vcmask 23552
  %411 = vst.msk [vmem:[%s5] sm:$0xff] %vm410, %v407
  // Predicated region
  $region22: #{classification_model_forward.1} parent=0 // pred_check
    _
  $region23: #{classification_model_forward.1} parent=0 // pred_check_branch
    %413 = sbr.rel (0) target = $region25
  $region24: #{classification_model_forward.1} parent=0 // pred_region
    _
  $region25: #{classification_model_forward.1} parent=0 // pred_fallthru
    _
  // Predicated region
  $region26: #{classification_model_forward.1} parent=0 // pred_check
    _
  $region27: #{classification_model_forward.1} parent=0 // pred_check_branch
    %415 = sbr.rel (0) target = $region29
  $region28: #{classification_model_forward.1} parent=0 // pred_region
    _
  $region29: #{classification_model_forward.1} parent=0 // pred_fallthru
    _

</llo_original>
